<compile_context>
chip_gen: v7x
topology: tpu7x:2x2x1
jax: 0.10.0
libtpu: 0.0.40
codegen_flags: <defaults>
</compile_context>

<pallas_src>
import jax
import jax.numpy as jnp
from jax import lax
from jax.experimental import pallas as pl
from jax.experimental.pallas import tpu as pltpu

EPS = 1e-5          # nn.BatchNorm2d default eps
KMAX = 5            # largest branch kernel
PAD = (KMAX - 1) // 2


# ----------------------------------------------------------------------------
# Fused kernel: [3-branch conv GEMM] -> BN+ReLU -> [1x1 conv GEMM] -> BN+ReLU
# ----------------------------------------------------------------------------
def _fused_inception_kernel(p_ref, wcat_ref, bcat_ref, gcat_ref, becat_ref,
                            wf_ref, bf_ref, gf_ref, bef_ref, o_ref):
    # p_ref    : (25*C, NHW)  bf16  transposed im2col (NHW on the lane axis)
    # wcat_ref : (3C, 25*C)   bf16  all three branch conv weights, tap-embedded
    # *_cat    : (3C, 1)      f32   per-branch conv bias / BN gamma / BN beta
    # wf_ref   : (C, 3C)      f32   final 1x1 conv weight (conv form)
    # o_ref    : (C, NHW)     f32

    # --- all three branch convs as one MXU GEMM (f32 accumulation) -----------
    acc3 = jnp.dot(wcat_ref[...], p_ref[...],
                   preferred_element_type=jnp.float32)            # (3C, NHW)
    acc3 = acc3 + bcat_ref[...]

    # --- per-channel BatchNorm (training batch stats) + ReLU, lane-dense -----
    mean3 = jnp.mean(acc3, axis=1, keepdims=True)                 # (3C, 1)
    diff3 = acc3 - mean3
    var3 = jnp.mean(diff3 * diff3, axis=1, keepdims=True)
    scale3 = gcat_ref[...] * lax.rsqrt(var3 + EPS)                # EUP rsqrt
    shift3 = becat_ref[...] - mean3 * scale3
    d = jnp.maximum(acc3 * scale3 + shift3, 0.0)                  # concat(X,Y,Z)

    # --- final 1x1 conv (channel mix) + BatchNorm + ReLU ----------------------
    accf = jnp.dot(wf_ref[...], d, preferred_element_type=jnp.float32)  # (C, NHW)
    accf = accf + bf_ref[...]
    meanf = jnp.mean(accf, axis=1, keepdims=True)
    difff = accf - meanf
    varf = jnp.mean(difff * difff, axis=1, keepdims=True)
    scalef = gf_ref[...] * lax.rsqrt(varf + EPS)
    shiftf = bef_ref[...] - meanf * scalef
    o_ref[...] = jnp.maximum(accf * scalef + shiftf, 0.0)


# ----------------------------------------------------------------------------
# Wrapper-side layout plumbing
# ----------------------------------------------------------------------------
def _conv_weight_from_transpose(wt):
    # PyTorch ConvTranspose2d weight (Cin, Cout, k, k), stride=1, pad=(k-1)//2
    # == ordinary same-padded conv with channel-swapped, spatially flipped w.
    return jnp.flip(wt, axis=(2, 3)).transpose(1, 0, 2, 3)        # (Cout, Cin, k, k)


def _embed_in_5x5(wconv, k):
    # Embed a (Cout, Cin, k, k) conv weight into the 5x5 tap grid used by the
    # single fused GEMM (column index = tap*Cin + cin).
    p = (KMAX - k) // 2
    wp = jnp.pad(wconv, ((0, 0), (0, 0), (p, p), (p, p)))         # (Cout, Cin, 5, 5)
    cout, cin = wconv.shape[0], wconv.shape[1]
    return wp.transpose(0, 2, 3, 1).reshape(cout, KMAX * KMAX * cin)


def _build_combined_weight(params):
    wc1 = _conv_weight_from_transpose(params["w1"])
    wc3 = _conv_weight_from_transpose(params["w3"])
    wc5 = _conv_weight_from_transpose(params["w5"])
    # Row order [X(conv1), Y(conv3), Z(conv5)] matches torch.cat((X,Y),1),Z.
    return jnp.concatenate(
        [_embed_in_5x5(wc1, 1), _embed_in_5x5(wc3, 3), _embed_in_5x5(wc5, 5)],
        axis=0)                                                    # (3C, 25*C)


def _im2col_transposed(x_nchw):
    # Pad ONCE with the max halo and build the (25*C, N*H*W) transposed im2col
    # slab (N*H*W on the minor/lane axis).
    N, C, H, W = x_nchw.shape
    xp = jnp.pad(x_nchw, ((0, 0), (0, 0), (PAD, PAD), (PAD, PAD)))
    taps = [lax.slice(xp, (0, 0, dy, dx), (N, C, dy + H, dx + W))
            for dy in range(KMAX) for dx in range(KMAX)]           # 25 x (N,C,H,W)
    pm = jnp.stack(taps, axis=0).transpose(0, 2, 1, 3, 4)          # (25, C, N, H, W)
    return pm.reshape(KMAX * KMAX * C, N * H * W)


@jax.jit
def inception_forward(x_nchw, params):
    N, C, H, W = x_nchw.shape
    NHW = N * H * W

    pm = _im2col_transposed(x_nchw).astype(jnp.bfloat16)           # (25C, NHW)
    wcat = _build_combined_weight(params).astype(jnp.bfloat16)     # (3C, 25C)
    bcat = jnp.concatenate([params["b1"], params["b3"], params["b5"]]).reshape(3 * C, 1)
    gcat = jnp.concatenate([params["g1"], params["g3"], params["g5"]]).reshape(3 * C, 1)
    becat = jnp.concatenate([params["be1"], params["be3"], params["be5"]]).reshape(3 * C, 1)
    wf_t = params["wf"][:, :, 0, 0].T                              # (C, 3C)
    bf = params["bf"].reshape(C, 1)
    gf = params["gf"].reshape(C, 1)
    bef = params["bef"].reshape(C, 1)

    vmem = pl.BlockSpec(memory_space=pltpu.MemorySpace.VMEM)
    out = pl.pallas_call(
        _fused_inception_kernel,
        out_shape=jax.ShapeDtypeStruct((C, NHW), jnp.float32),
        in_specs=[vmem] * 9,
        out_specs=vmem,
        compiler_params=pltpu.CompilerParams(vmem_limit_bytes=32 * 1024 * 1024),
    )(pm, wcat, bcat, gcat, becat, wf_t, bf, gf, bef)

    # (C, N*H*W) -> (N, C, H, W)
    return out.reshape(C, N, H, W).transpose(1, 0, 2, 3)


# ----------------------------------------------------------------------------
# Parameters (matches the PyTorch module's __init__ shapes / defaults)
# ----------------------------------------------------------------------------
def init_params(num_channels, key):
    C = num_channels
    ks = jax.random.split(key, 8)

    def convt(kw, kb, cin, cout, k):
        bound = 1.0 / (cin * k * k) ** 0.5
        w = jax.random.uniform(kw, (cin, cout, k, k), jnp.float32, -bound, bound)
        b = jax.random.uniform(kb, (cout,), jnp.float32, -bound, bound)
        return w, b

    p = {}
    p["w1"], p["b1"] = convt(ks[0], ks[1], C, C, 1)
    p["w3"], p["b3"] = convt(ks[2], ks[3], C, C, 3)
    p["w5"], p["b5"] = convt(ks[4], ks[5], C, C, 5)
    p["wf"], p["bf"] = convt(ks[6], ks[7], 3 * C, C, 1)
    # nn.BatchNorm2d default affine init: weight=1, bias=0 (batch-stat forward).
    for name in ("1", "3", "5", "f"):
        p["g" + name] = jnp.ones((C,), jnp.float32)
        p["be" + name] = jnp.zeros((C,), jnp.float32)
    return p


# ----------------------------------------------------------------------------
# Pure-JAX f32 reference (independent code path) for a correctness check
# ----------------------------------------------------------------------------
def _reference_forward(x, params):
    def branch(inp, wt, b, g, be, k):
        p = (k - 1) // 2
        wc = _conv_weight_from_transpose(wt)
        y = lax.conv_general_dilated(inp, wc, (1, 1), ((p, p), (p, p)),
                                     dimension_numbers=("NCHW", "OIHW", "NCHW"))
        y = y + b.reshape(1, -1, 1, 1)
        m = jnp.mean(y, axis=(0, 2, 3), keepdims=True)
        v = jnp.mean((y - m) ** 2, axis=(0, 2, 3), keepdims=True)
        y = (y - m) * lax.rsqrt(v + EPS) * g.reshape(1, -1, 1, 1) + be.reshape(1, -1, 1, 1)
        return jnp.maximum(y, 0.0)

    X = branch(x, params["w1"], params["b1"], params["g1"], params["be1"], 1)
    Y = branch(x, params["w3"], params["b3"], params["g3"], params["be3"], 3)
    Z = branch(x, params["w5"], params["b5"], params["g5"], params["be5"], 5)
    D = jnp.concatenate([X, Y, Z], axis=1)
    return branch(D, params["wf"], params["bf"], params["gf"], params["bef"], 1)


if __name__ == "__main__":
    key = jax.random.PRNGKey(0)
    k_x, k_p = jax.random.split(key)

    N, C, H, W = 2, 4, 16, 16
    x = jax.random.normal(k_x, (N, C, H, W), jnp.float32)
    params = init_params(C, k_p)

    out = jax.block_until_ready(inception_forward(x, params))
    assert out.shape == (N, C, H, W), out.shape
    assert bool(jnp.all(jnp.isfinite(out)))
    assert bool(jnp.all(out >= 0.0))          # ReLU output

    ref = _reference_forward(x, params)
    err = float(jnp.max(jnp.abs(out - ref)))
    assert err < 0.3, f"max abs diff vs f32 reference too large: {err}"

    print("KERNEL_OK")
</pallas_src>

<mosaic_0001>
module attributes {stable_mosaic.version = 11 : i64} {
  func.func @_fused_inception_kernel(%arg0: memref<100x512xbf16, #tpu.memory_space<vmem>>, %arg1: memref<12x100xbf16, #tpu.memory_space<vmem>>, %arg2: memref<12x1xf32, #tpu.memory_space<vmem>>, %arg3: memref<12x1xf32, #tpu.memory_space<vmem>>, %arg4: memref<12x1xf32, #tpu.memory_space<vmem>>, %arg5: memref<4x12xf32, #tpu.memory_space<vmem>>, %arg6: memref<4x1xf32, #tpu.memory_space<vmem>>, %arg7: memref<4x1xf32, #tpu.memory_space<vmem>>, %arg8: memref<4x1xf32, #tpu.memory_space<vmem>>, %arg9: memref<4x512xf32, #tpu.memory_space<vmem>>) attributes {dimension_semantics = [], scalar_prefetch = 0 : i64, scratch_operands = 0 : i64, tpu.core_type = #tpu.core_type<tc>} {
    %c0 = arith.constant 0 : index
    %c0_0 = arith.constant 0 : index
    %0 = vector.load %arg1[%c0, %c0_0] : memref<12x100xbf16, #tpu.memory_space<vmem>>, vector<12x100xbf16>
    %c0_1 = arith.constant 0 : index
    %c0_2 = arith.constant 0 : index
    %1 = vector.load %arg0[%c0_1, %c0_2] : memref<100x512xbf16, #tpu.memory_space<vmem>>, vector<100x512xbf16>
    %cst = arith.constant dense<0.000000e+00> : vector<12x512xf32>
    %2 = tpu.matmul %0, %1, %cst {dimension_numbers = #tpu.dot_dimension_numbers<[1], [0], [0], [1], [0, 0, 1, 1], [], []>} : vector<12x100xbf16>, vector<100x512xbf16>, vector<12x512xf32> -> vector<12x512xf32>
    %c0_3 = arith.constant 0 : index
    %c0_4 = arith.constant 0 : index
    %3 = vector.load %arg2[%c0_3, %c0_4] : memref<12x1xf32, #tpu.memory_space<vmem>>, vector<12x1xf32>
    %4 = vector.broadcast %3 : vector<12x1xf32> to vector<12x512xf32>
    %5 = arith.addf %2, %4 : vector<12x512xf32>
    %cst_5 = arith.constant dense<0.000000e+00> : vector<12xf32>
    %6 = vector.multi_reduction <add>, %5, %cst_5 [1] : vector<12x512xf32> to vector<12xf32>
    %7 = vector.shape_cast %6 : vector<12xf32> to vector<12x1xf32>
    %cst_6 = arith.constant 5.120000e+02 : f32
    %8 = vector.broadcast %cst_6 : f32 to vector<12x1xf32>
    %9 = arith.divf %7, %8 : vector<12x1xf32>
    %10 = vector.broadcast %9 : vector<12x1xf32> to vector<12x512xf32>
    %11 = arith.subf %5, %10 : vector<12x512xf32>
    %12 = arith.mulf %11, %11 : vector<12x512xf32>
    %cst_7 = arith.constant dense<0.000000e+00> : vector<12xf32>
    %13 = vector.multi_reduction <add>, %12, %cst_7 [1] : vector<12x512xf32> to vector<12xf32>
    %14 = vector.shape_cast %13 : vector<12xf32> to vector<12x1xf32>
    %cst_8 = arith.constant 5.120000e+02 : f32
    %15 = vector.broadcast %cst_8 : f32 to vector<12x1xf32>
    %16 = arith.divf %14, %15 : vector<12x1xf32>
    %c0_9 = arith.constant 0 : index
    %c0_10 = arith.constant 0 : index
    %17 = vector.load %arg3[%c0_9, %c0_10] : memref<12x1xf32, #tpu.memory_space<vmem>>, vector<12x1xf32>
    %cst_11 = arith.constant 9.99999974E-6 : f32
    %18 = vector.broadcast %cst_11 : f32 to vector<12x1xf32>
    %19 = arith.addf %16, %18 : vector<12x1xf32>
    %20 = math.rsqrt %19 : vector<12x1xf32>
    %21 = arith.mulf %17, %20 : vector<12x1xf32>
    %c0_12 = arith.constant 0 : index
    %c0_13 = arith.constant 0 : index
    %22 = vector.load %arg4[%c0_12, %c0_13] : memref<12x1xf32, #tpu.memory_space<vmem>>, vector<12x1xf32>
    %23 = arith.mulf %9, %21 : vector<12x1xf32>
    %24 = arith.subf %22, %23 : vector<12x1xf32>
    %25 = vector.broadcast %21 : vector<12x1xf32> to vector<12x512xf32>
    %26 = arith.mulf %5, %25 : vector<12x512xf32>
    %27 = vector.broadcast %24 : vector<12x1xf32> to vector<12x512xf32>
    %28 = arith.addf %26, %27 : vector<12x512xf32>
    %cst_14 = arith.constant 0.000000e+00 : f32
    %29 = vector.broadcast %cst_14 : f32 to vector<12x512xf32>
    %30 = arith.maximumf %28, %29 : vector<12x512xf32>
    %c0_15 = arith.constant 0 : index
    %c0_16 = arith.constant 0 : index
    %31 = vector.load %arg5[%c0_15, %c0_16] : memref<4x12xf32, #tpu.memory_space<vmem>>, vector<4x12xf32>
    %cst_17 = arith.constant dense<0.000000e+00> : vector<4x512xf32>
    %32 = tpu.matmul %31, %30, %cst_17 {dimension_numbers = #tpu.dot_dimension_numbers<[1], [0], [0], [1], [0, 0, 1, 1], [], []>} : vector<4x12xf32>, vector<12x512xf32>, vector<4x512xf32> -> vector<4x512xf32>
    %c0_18 = arith.constant 0 : index
    %c0_19 = arith.constant 0 : index
    %33 = vector.load %arg6[%c0_18, %c0_19] : memref<4x1xf32, #tpu.memory_space<vmem>>, vector<4x1xf32>
    %34 = vector.broadcast %33 : vector<4x1xf32> to vector<4x512xf32>
    %35 = arith.addf %32, %34 : vector<4x512xf32>
    %cst_20 = arith.constant dense<0.000000e+00> : vector<4xf32>
    %36 = vector.multi_reduction <add>, %35, %cst_20 [1] : vector<4x512xf32> to vector<4xf32>
    %37 = vector.shape_cast %36 : vector<4xf32> to vector<4x1xf32>
    %cst_21 = arith.constant 5.120000e+02 : f32
    %38 = vector.broadcast %cst_21 : f32 to vector<4x1xf32>
    %39 = arith.divf %37, %38 : vector<4x1xf32>
    %40 = vector.broadcast %39 : vector<4x1xf32> to vector<4x512xf32>
    %41 = arith.subf %35, %40 : vector<4x512xf32>
    %42 = arith.mulf %41, %41 : vector<4x512xf32>
    %cst_22 = arith.constant dense<0.000000e+00> : vector<4xf32>
    %43 = vector.multi_reduction <add>, %42, %cst_22 [1] : vector<4x512xf32> to vector<4xf32>
    %44 = vector.shape_cast %43 : vector<4xf32> to vector<4x1xf32>
    %cst_23 = arith.constant 5.120000e+02 : f32
    %45 = vector.broadcast %cst_23 : f32 to vector<4x1xf32>
    %46 = arith.divf %44, %45 : vector<4x1xf32>
    %c0_24 = arith.constant 0 : index
    %c0_25 = arith.constant 0 : index
    %47 = vector.load %arg7[%c0_24, %c0_25] : memref<4x1xf32, #tpu.memory_space<vmem>>, vector<4x1xf32>
    %cst_26 = arith.constant 9.99999974E-6 : f32
    %48 = vector.broadcast %cst_26 : f32 to vector<4x1xf32>
    %49 = arith.addf %46, %48 : vector<4x1xf32>
    %50 = math.rsqrt %49 : vector<4x1xf32>
    %51 = arith.mulf %47, %50 : vector<4x1xf32>
    %c0_27 = arith.constant 0 : index
    %c0_28 = arith.constant 0 : index
    %52 = vector.load %arg8[%c0_27, %c0_28] : memref<4x1xf32, #tpu.memory_space<vmem>>, vector<4x1xf32>
    %53 = arith.mulf %39, %51 : vector<4x1xf32>
    %54 = arith.subf %52, %53 : vector<4x1xf32>
    %55 = vector.broadcast %51 : vector<4x1xf32> to vector<4x512xf32>
    %56 = arith.mulf %35, %55 : vector<4x512xf32>
    %57 = vector.broadcast %54 : vector<4x1xf32> to vector<4x512xf32>
    %58 = arith.addf %56, %57 : vector<4x512xf32>
    %cst_29 = arith.constant 0.000000e+00 : f32
    %59 = vector.broadcast %cst_29 : f32 to vector<4x512xf32>
    %60 = arith.maximumf %58, %59 : vector<4x512xf32>
    %c0_30 = arith.constant 0 : index
    %c0_31 = arith.constant 0 : index
    %61 = vector.load %arg9[%c0_30, %c0_31] : memref<4x512xf32, #tpu.memory_space<vmem>>, vector<4x512xf32>
    tpu.vector_store %arg9[%c0_30, %c0_31], %60 {strides = array<i32>} : memref<4x512xf32, #tpu.memory_space<vmem>>, vector<4x512xf32>,
    return
  }
}

</mosaic_0001>

<llo_original>
// kernel: inception_forward.1
$region0: #{inception_forward.1}
  #allocation0 [shape = 'u32[]', space=smem, size = 0x4, offset = 0x4, fixed_abs, tag = 'smem constant byte address 0x4 - core index']
  #allocation1 [shape = 'u32[144,128]{1,0:T(1,128)}', space=vmem, size = 0x12000, scoped, tag = 'internal scratch']
  %s0 = inlined_call_operand.vmem [shape: bf16[100,512], index: 0, kind: input, shape index: {}]
  %s1 = inlined_call_operand.vmem [shape: bf16[12,100], index: 1, kind: input, shape index: {}]
  %s2 = inlined_call_operand.vmem [shape: f32[12,1], index: 2, kind: input, shape index: {}]
  %s3 = inlined_call_operand.vmem [shape: f32[12,1], index: 3, kind: input, shape index: {}]
  %s4 = inlined_call_operand.vmem [shape: f32[12,1], index: 4, kind: input, shape index: {}]
  %s5 = inlined_call_operand.vmem [shape: f32[4,12], index: 5, kind: input, shape index: {}]
  %s6 = inlined_call_operand.vmem [shape: f32[4,1], index: 6, kind: input, shape index: {}]
  %s7 = inlined_call_operand.vmem [shape: f32[4,1], index: 7, kind: input, shape index: {}]
  %s8 = inlined_call_operand.vmem [shape: f32[4,1], index: 8, kind: input, shape index: {}]
  %s9 = inlined_call_operand.vmem [shape: f32[4,512], index: 9, kind: output, shape index: {}]
  %s10 = sld [smem:[#allocation0]]
  $region46: #{inception_forward.1} parent=0
    _
  %s12 = ssub.s32 1, %s10
  %s13 = scalar_select 0, %s12, %s10
  // Predicated region
  $region2: #{inception_forward.1} parent=0 // pred_check
    _
  $region3: #{inception_forward.1} parent=0 // pred_check_branch
    %15 = sbr.rel (0) target = $region5
  $region4: #{inception_forward.1} parent=0 // pred_region
    _
  $region5: #{inception_forward.1} parent=0 // pred_fallthru
    _
  // Predicated region
  $region6: #{inception_forward.1} parent=0 // pred_check
    _
  $region7: #{inception_forward.1} parent=0 // pred_check_branch
    %17 = sbr.rel (0) target = $region9
  $region8: #{inception_forward.1} parent=0 // pred_region
    _
  $region9: #{inception_forward.1} parent=0 // pred_fallthru
    _
  // Predicated region
  $region10: #{inception_forward.1} parent=0 // pred_check
    _
  $region11: #{inception_forward.1} parent=0 // pred_check_branch
    %19 = sbr.rel (0) target = $region13
  $region12: #{inception_forward.1} parent=0 // pred_region
    _
  $region13: #{inception_forward.1} parent=0 // pred_fallthru
    _
  // Predicated region
  $region14: #{inception_forward.1} parent=0 // pred_check
    _
  $region15: #{inception_forward.1} parent=0 // pred_check_branch
    %21 = sbr.rel (0) target = $region17
  $region16: #{inception_forward.1} parent=0 // pred_region
    _
  $region17: #{inception_forward.1} parent=0 // pred_fallthru
    _
  // Predicated region
  $region18: #{inception_forward.1} parent=0 // pred_check
    _
  $region19: #{inception_forward.1} parent=0 // pred_check_branch
    %23 = sbr.rel (0) target = $region21
  $region20: #{inception_forward.1} parent=0 // pred_region
    _
  $region21: #{inception_forward.1} parent=0 // pred_fallthru
    _
  // Predicated region
  $region22: #{inception_forward.1} parent=0 // pred_check
    _
  $region23: #{inception_forward.1} parent=0 // pred_check_branch
    %25 = sbr.rel (0) target = $region25
  $region24: #{inception_forward.1} parent=0 // pred_region
    _
  $region25: #{inception_forward.1} parent=0 // pred_fallthru
    _
  // Predicated region
  $region26: #{inception_forward.1} parent=0 // pred_check
    _
  $region27: #{inception_forward.1} parent=0 // pred_check_branch
    %27 = sbr.rel (0) target = $region29
  $region28: #{inception_forward.1} parent=0 // pred_region
    _
  $region29: #{inception_forward.1} parent=0 // pred_fallthru
    _
  // Predicated region
  $region30: #{inception_forward.1} parent=0 // pred_check
    _
  $region31: #{inception_forward.1} parent=0 // pred_check_branch
    %29 = sbr.rel (0) target = $region33
  $region32: #{inception_forward.1} parent=0 // pred_region
    _
  $region33: #{inception_forward.1} parent=0 // pred_fallthru
    _
  // Predicated region
  $region34: #{inception_forward.1} parent=0 // pred_check
    _
  $region35: #{inception_forward.1} parent=0 // pred_check_branch
    %31 = sbr.rel (0) target = $region37
  $region36: #{inception_forward.1} parent=0 // pred_region
    _
  $region37: #{inception_forward.1} parent=0 // pred_fallthru
    _
  %v33 = vld [vmem:[%s1] sm:$0xf]
  %v34 = vld [vmem:[%s1 + $0x4] sm:$0x3]
  %v35 = vld [vmem:[%s0] sm:$0xff]
  %v36 = vld [vmem:[%s0 + $0x8] sm:$0xff]
  %v37 = vld [vmem:[%s0 + $0x10] sm:$0xff]
  %v38 = vld [vmem:[%s0 + $0x18] sm:$0xff]
  %v39 = vld [vmem:[%s0 + $0x20] sm:$0xff]
  %v40 = vld [vmem:[%s0 + $0x28] sm:$0xff]
  %v41 = vld [vmem:[%s0 + $0x30] sm:$0xff]
  %v42 = vld [vmem:[%s0 + $0x38] sm:$0xff]
  %v43 = vld [vmem:[%s0 + $0x40] sm:$0xff]
  %v44 = vld [vmem:[%s0 + $0x48] sm:$0xff]
  %v45 = vld [vmem:[%s0 + $0x50] sm:$0xff]
  %v46 = vld [vmem:[%s0 + $0x58] sm:$0xff]
  %v47 = vld [vmem:[%s0 + $0x60] sm:$0xff]
  %v48 = vld [vmem:[%s0 + $0x68] sm:$0xff]
  %v49 = vld [vmem:[%s0 + $0x70] sm:$0xff]
  %v50 = vld [vmem:[%s0 + $0x78] sm:$0xff]
  %v51 = vld [vmem:[%s0 + $0x80] sm:$0xff]
  %v52 = vld [vmem:[%s0 + $0x88] sm:$0xff]
  %v53 = vld [vmem:[%s0 + $0x90] sm:$0xff]
  %v54 = vld [vmem:[%s0 + $0x98] sm:$0xff]
  %v55 = vld [vmem:[%s0 + $0xa0] sm:$0xff]
  %v56 = vld [vmem:[%s0 + $0xa8] sm:$0xff]
  %v57 = vld [vmem:[%s0 + $0xb0] sm:$0xff]
  %v58 = vld [vmem:[%s0 + $0xb8] sm:$0xff]
  %v59 = vld [vmem:[%s0 + $0xc0] sm:$0x33]
  %v60 = vld [vmem:[%s0 + $0xc8] sm:$0x33]
  %v61 = vld [vmem:[%s2] sm:$0xff]
  %v62 = vld [vmem:[%s2 + $0x8] sm:$0xf]
  %64 = vset.pattern.permute.xlu0 0
  %65 = vperm.xlu0 %64, %v61
  %v66 = vpop.permute.xlu0 %65
  %69 = vset.pattern.permute.xlu0 0
  %70 = vperm.xlu0 %69, %v62
  %v71 = vpop.permute.xlu0 %70
  %v75 = vunpack.c.l.b16 %v33
  %v76 = vunpack.c.l.b16 %v34
  %v77 = vpack.c.b16 %v76, %v75
  %v104 = vunpack.c.l.b16 %v35
  %v105 = vunpack.c.h.b16 %v35
  %v106 = vunpack.c.l.b16 %v36
  %v107 = vunpack.c.h.b16 %v36
  %v108 = vunpack.c.l.b16 %v37
  %v109 = vunpack.c.h.b16 %v37
  %v110 = vunpack.c.l.b16 %v38
  %v111 = vunpack.c.h.b16 %v38
  %v112 = vunpack.c.l.b16 %v39
  %v113 = vunpack.c.h.b16 %v39
  %v114 = vunpack.c.l.b16 %v40
  %v115 = vunpack.c.h.b16 %v40
  %v116 = vunpack.c.l.b16 %v41
  %v117 = vunpack.c.h.b16 %v41
  %v118 = vunpack.c.l.b16 %v42
  %v119 = vunpack.c.h.b16 %v42
  %v120 = vunpack.c.l.b16 %v43
  %v121 = vunpack.c.h.b16 %v43
  %v122 = vunpack.c.l.b16 %v44
  %v123 = vunpack.c.h.b16 %v44
  %v124 = vunpack.c.l.b16 %v45
  %v125 = vunpack.c.h.b16 %v45
  %v126 = vunpack.c.l.b16 %v46
  %v127 = vunpack.c.h.b16 %v46
  %v128 = vunpack.c.l.b16 %v47
  %v129 = vunpack.c.h.b16 %v47
  %v130 = vunpack.c.l.b16 %v48
  %v131 = vunpack.c.h.b16 %v48
  %v132 = vunpack.c.l.b16 %v49
  %v133 = vunpack.c.h.b16 %v49
  %v134 = vunpack.c.l.b16 %v50
  %v135 = vunpack.c.h.b16 %v50
  %v136 = vunpack.c.l.b16 %v51
  %v137 = vunpack.c.h.b16 %v51
  %v138 = vunpack.c.l.b16 %v52
  %v139 = vunpack.c.h.b16 %v52
  %v140 = vunpack.c.l.b16 %v53
  %v141 = vunpack.c.h.b16 %v53
  %v142 = vunpack.c.l.b16 %v54
  %v143 = vunpack.c.h.b16 %v54
  %v144 = vunpack.c.l.b16 %v55
  %v145 = vunpack.c.h.b16 %v55
  %v146 = vunpack.c.l.b16 %v56
  %v147 = vunpack.c.h.b16 %v56
  %v148 = vunpack.c.l.b16 %v57
  %v149 = vunpack.c.h.b16 %v57
  %v150 = vunpack.c.l.b16 %v58
  %v151 = vunpack.c.h.b16 %v58
  %v152 = vunpack.c.l.b16 %v59
  %v153 = vunpack.c.h.b16 %v59
  %v154 = vunpack.c.l.b16 %v60
  %v155 = vunpack.c.h.b16 %v60
  %v156 = vpack.c.b16 %v108, %v104
  %v157 = vpack.c.b16 %v109, %v105
  %v158 = vpack.c.b16 %v110, %v106
  %v159 = vpack.c.b16 %v111, %v107
  %v160 = vpack.c.b16 %v116, %v112
  %v161 = vpack.c.b16 %v117, %v113
  %v162 = vpack.c.b16 %v118, %v114
  %v163 = vpack.c.b16 %v119, %v115
  %v164 = vpack.c.b16 %v124, %v120
  %v165 = vpack.c.b16 %v125, %v121
  %v166 = vpack.c.b16 %v126, %v122
  %v167 = vpack.c.b16 %v127, %v123
  %v168 = vpack.c.b16 %v132, %v128
  %v169 = vpack.c.b16 %v133, %v129
  %v170 = vpack.c.b16 %v134, %v130
  %v171 = vpack.c.b16 %v135, %v131
  %v172 = vpack.c.b16 %v140, %v136
  %v173 = vpack.c.b16 %v141, %v137
  %v174 = vpack.c.b16 %v142, %v138
  %v175 = vpack.c.b16 %v143, %v139
  %v176 = vpack.c.b16 %v148, %v144
  %v177 = vpack.c.b16 %v149, %v145
  %v178 = vpack.c.b16 %v150, %v146
  %v179 = vpack.c.b16 %v151, %v147
  %v180 = vpack.c.b16 %v152, %v152
  %v181 = vpack.c.b16 %v153, %v153
  %v182 = vpack.c.b16 %v154, %v154
  %v183 = vpack.c.b16 %v155, %v155
  %vm208 = vcmask 818176
  %v210 = vsel %vm208, %v77, 0
  %vm212 = vcmask 1041408
  %v214 = vsel %vm212, %v180, 0
  %v217 = vsel %vm212, %v181, 0
  %v220 = vsel %vm212, %v182, 0
  %v223 = vsel %vm212, %v183, 0
  %225 = vmatprep.subr.bf16.mxu0 %v157
  %226 = vmatpush1.bf16.msra.mxu0 %v156
  %227 = vmatprep.subr.bf16.mxu0 %v161
  %228 = vmatpush1.bf16.msra.mxu0 %v160
  %229 = vmatprep.subr.bf16.mxu0 %v165
  %230 = vmatpush1.bf16.msra.mxu0 %v164
  %231 = vmatprep.subr.bf16.mxu0 %v169
  %232 = vmatpush1.bf16.msra.mxu0 %v168
  %233 = vmatprep.subr.bf16.mxu0 %v173
  %234 = vmatpush1.bf16.msra.mxu0 %v172
  %235 = vmatprep.subr.bf16.mxu0 %v177
  %236 = vmatpush1.bf16.msra.mxu0 %v176
  %237 = vmatprep.subr.bf16.mxu0 %v217
  %238 = vmatpush1.bf16.msra.mxu0 %v214
  %239 = vmatprep.subr.bf16.mxu0 0
  %240 = vmatpush1.bf16.msra.mxu0 0
  %241 = vmatprep.subr.bf16.mxu0 0
  %242 = vmatpush1.bf16.msra.mxu0 0
  %243 = vmatprep.subr.bf16.mxu0 0
  %244 = vmatpush1.bf16.msra.mxu0 0
  %245 = vmatprep.subr.bf16.mxu0 0
  %246 = vmatpush1.bf16.msra.mxu0 0
  %247 = vmatprep.subr.bf16.mxu0 0
  %248 = vmatpush1.bf16.msra.mxu0 0
  %249 = vmatprep.subr.bf16.mxu0 0
  %250 = vmatpush1.bf16.msra.mxu0 0
  %251 = vmatprep.subr.bf16.mxu0 0
  %252 = vmatpush1.bf16.msra.mxu0 0
  %253 = vmatprep.subr.bf16.mxu0 0
  %254 = vmatpush1.bf16.msra.mxu0 0
  %255 = vmatprep.subr.bf16.mxu0 0
  %256 = vmatpush1.bf16.msra.mxu0 0
  %257 = vmatprep.mubr.bf16.mxu0 0
  %258 = vmatmul.mubr.bf16.gmra.mrb[0].mxu0 %v210
  %v259 = vpop.f32.mrb[0].mxu0
  %v260 = vadd.f32 %v66, %v259
  %v261 = vpop.f32.mrb[0].mxu0
  %v262 = vadd.f32 %v66, %v261
  %v263 = vpop.f32.mrb[0].mxu0
  %v264 = vadd.f32 %v71, %v263
  %v265 = vpop.f32.mrb[0].mxu0
  %v266 = vadd.f32 %v71, %v265
  %267 = vdwg.mxu0
  %268 = vmatprep.subr.bf16.mxu0 %v159
  %269 = vmatpush1.bf16.msra.mxu0 %v158
  %270 = vmatprep.subr.bf16.mxu0 %v163
  %271 = vmatpush1.bf16.msra.mxu0 %v162
  %272 = vmatprep.subr.bf16.mxu0 %v167
  %273 = vmatpush1.bf16.msra.mxu0 %v166
  %274 = vmatprep.subr.bf16.mxu0 %v171
  %275 = vmatpush1.bf16.msra.mxu0 %v170
  %276 = vmatprep.subr.bf16.mxu0 %v175
  %277 = vmatpush1.bf16.msra.mxu0 %v174
  %278 = vmatprep.subr.bf16.mxu0 %v179
  %279 = vmatpush1.bf16.msra.mxu0 %v178
  %280 = vmatprep.subr.bf16.mxu0 %v223
  %281 = vmatpush1.bf16.msra.mxu0 %v220
  %282 = vmatprep.subr.bf16.mxu0 0
  %283 = vmatpush1.bf16.msra.mxu0 0
  %284 = vmatprep.subr.bf16.mxu0 0
  %285 = vmatpush1.bf16.msra.mxu0 0
  %286 = vmatprep.subr.bf16.mxu0 0
  %287 = vmatpush1.bf16.msra.mxu0 0
  %288 = vmatprep.subr.bf16.mxu0 0
  %289 = vmatpush1.bf16.msra.mxu0 0
  %290 = vmatprep.subr.bf16.mxu0 0
  %291 = vmatpush1.bf16.msra.mxu0 0
  %292 = vmatprep.subr.bf16.mxu0 0
  %293 = vmatpush1.bf16.msra.mxu0 0
  %294 = vmatprep.subr.bf16.mxu0 0
  %295 = vmatpush1.bf16.msra.mxu0 0
  %296 = vmatprep.subr.bf16.mxu0 0
  %297 = vmatpush1.bf16.msra.mxu0 0
  %298 = vmatprep.subr.bf16.mxu0 0
  %299 = vmatpush1.bf16.msra.mxu0 0
  %300 = vmatprep.mubr.bf16.mxu0 0
  %301 = vmatmul.mubr.bf16.gmra.mrb[0].mxu0 %v210
  %v302 = vpop.f32.mrb[0].mxu0
  %v303 = vadd.f32 %v66, %v302
  %v304 = vpop.f32.mrb[0].mxu0
  %v305 = vadd.f32 %v66, %v304
  %v306 = vpop.f32.mrb[0].mxu0
  %v307 = vadd.f32 %v71, %v306
  %v308 = vpop.f32.mrb[0].mxu0
  %v309 = vadd.f32 %v71, %v308
  %310 = vdwg.mxu0
  %v311 = vadd.f32 %v260, %v262
  %v312 = vadd.f32 %v311, %v303
  %v313 = vadd.f32 %v312, %v305
  %314 = vadd.xlane.f32.xlu0 %v313
  %v315 = vpop.xlane.xlu0 %314
  %vm316 = vcmask 1043456
  %v317 = vsel %vm316, %v264, 0.0
  %v318 = vsel %vm316, %v266, 0.0
  %v319 = vadd.f32 %v317, %v318
  %v320 = vsel %vm316, %v307, 0.0
  %v321 = vadd.f32 %v319, %v320
  %v322 = vsel %vm316, %v309, 0.0
  %v323 = vadd.f32 %v321, %v322
  %324 = vadd.xlane.f32.xlu0 %v323
  %v325 = vpop.xlane.xlu0 %324
  %v326 = vrcp.pop 512.0
  %v327 = vmul.f32 %v315, %v326
  %v328 = vmul.f32 %v325, %v326
  %v329 = vsub.f32 %v260, %v327
  %v330 = vsub.f32 %v262, %v327
  %v331 = vsub.f32 %v303, %v327
  %v332 = vsub.f32 %v305, %v327
  %v333 = vsub.f32 %v264, %v328
  %v334 = vsub.f32 %v266, %v328
  %v335 = vsub.f32 %v307, %v328
  %v336 = vsub.f32 %v309, %v328
  %v337 = vmul.f32 %v329, %v329
  %v338 = vmul.f32 %v330, %v330
  %v339 = vmul.f32 %v331, %v331
  %v340 = vmul.f32 %v332, %v332
  %v341 = vmul.f32 %v333, %v333
  %v342 = vmul.f32 %v334, %v334
  %v343 = vmul.f32 %v335, %v335
  %v344 = vmul.f32 %v336, %v336
  %v345 = vadd.f32 %v337, %v338
  %v346 = vadd.f32 %v345, %v339
  %v347 = vadd.f32 %v346, %v340
  %348 = vadd.xlane.f32.xlu0 %v347
  %v349 = vpop.xlane.xlu0 %348
  %v350 = vsel %vm316, %v341, 0.0
  %v351 = vsel %vm316, %v342, 0.0
  %v352 = vadd.f32 %v350, %v351
  %v353 = vsel %vm316, %v343, 0.0
  %v354 = vadd.f32 %v352, %v353
  %v355 = vsel %vm316, %v344, 0.0
  %v356 = vadd.f32 %v354, %v355
  %357 = vadd.xlane.f32.xlu0 %v356
  %v358 = vpop.xlane.xlu0 %357
  %v359 = vmul.f32 %v349, %v326
  %v360 = vmul.f32 %v358, %v326
  %v361 = vld [vmem:[%s3] sm:$0xff]
  %v362 = vld [vmem:[%s3 + $0x8] sm:$0xf]
  %v363 = vadd.f32 %v359, 1e-05
  %v364 = vadd.f32 %v360, 1e-05
  %v365 = vrsqrt.pop %v363
  %v366 = vrsqrt.pop %v364
  %v367 = vmul.f32 %v361, %v365
  %v368 = vmul.f32 %v362, %v366
  %v369 = vld [vmem:[%s4] sm:$0xff]
  %v370 = vld [vmem:[%s4 + $0x8] sm:$0xf]
  %v371 = vmul.f32 %v327, %v367
  %v372 = vmul.f32 %v328, %v368
  %v373 = vsub.f32 %v369, %v371
  %v374 = vsub.f32 %v370, %v372
  %376 = vset.pattern.permute.xlu0 0
  %377 = vperm.xlu0 %376, %v367
  %v378 = vpop.permute.xlu0 %377
  %381 = vset.pattern.permute.xlu0 0
  %382 = vperm.xlu0 %381, %v368
  %v383 = vpop.permute.xlu0 %382
  %v385 = vmul.f32 %v260, %v378
  %v386 = vmul.f32 %v262, %v378
  %v387 = vmul.f32 %v303, %v378
  %v388 = vmul.f32 %v305, %v378
  %v389 = vmul.f32 %v264, %v383
  %v390 = vmul.f32 %v266, %v383
  %v391 = vmul.f32 %v307, %v383
  %v392 = vmul.f32 %v309, %v383
  %394 = vset.pattern.permute.xlu0 0
  %395 = vperm.xlu0 %394, %v373
  %v396 = vpop.permute.xlu0 %395
  %399 = vset.pattern.permute.xlu0 0
  %400 = vperm.xlu0 %399, %v374
  %v401 = vpop.permute.xlu0 %400
  %v403 = vadd.f32 %v385, %v396
  %v404 = vadd.f32 %v386, %v396
  %v405 = vadd.f32 %v387, %v396
  %v406 = vadd.f32 %v388, %v396
  %v407 = vadd.f32 %v389, %v401
  %v408 = vadd.f32 %v390, %v401
  %v409 = vadd.f32 %v391, %v401
  %v410 = vadd.f32 %v392, %v401
  %v411 = vmax.f32 %v403, 0.0
  %v412 = vmax.f32 %v404, 0.0
  %v413 = vmax.f32 %v405, 0.0
  %v414 = vmax.f32 %v406, 0.0
  %v415 = vmax.f32 %v407, 0.0
  %v416 = vmax.f32 %v408, 0.0
  %v417 = vmax.f32 %v409, 0.0
  %v418 = vmax.f32 %v410, 0.0
  %v419 = vld [vmem:[%s5] sm:$0xf]
  %v420 = vld [vmem:[%s6] sm:$0xf]
  %422 = vset.pattern.permute.xlu0 0
  %423 = vperm.xlu0 %422, %v420
  %v424 = vpop.permute.xlu0 %423
  %vm426 = vcmask 97280
  %v428 = vsel %vm426, %v419, 0
  %v431 = vsel %vm316, %v415, 0
  %v434 = vsel %vm316, %v416, 0
  %v437 = vsel %vm316, %v417, 0
  %v440 = vsel %vm316, %v418, 0
  %442 = vmatprep.subr.mxu0 %v412
  %443 = vmatpush1.msra.mxu0 %v411
  %444 = vmatprep.subr.mxu0 %v434
  %445 = vmatpush1.msra.mxu0 %v431
  %446 = vmatprep.subr.mxu0 0.0
  %447 = vmatpush1.msra.mxu0 0.0
  %448 = vmatprep.subr.mxu0 0.0
  %449 = vmatpush1.msra.mxu0 0.0
  %450 = vmatprep.subr.mxu0 0.0
  %451 = vmatpush1.msra.mxu0 0.0
  %452 = vmatprep.subr.mxu0 0.0
  %453 = vmatpush1.msra.mxu0 0.0
  %454 = vmatprep.subr.mxu0 0.0
  %455 = vmatpush1.msra.mxu0 0.0
  %456 = vmatprep.subr.mxu0 0.0
  %457 = vmatpush1.msra.mxu0 0.0
  %458 = vmatprep.subr.mxu0 0.0
  %459 = vmatpush1.msra.mxu0 0.0
  %460 = vmatprep.subr.mxu0 0.0
  %461 = vmatpush1.msra.mxu0 0.0
  %462 = vmatprep.subr.mxu0 0.0
  %463 = vmatpush1.msra.mxu0 0.0
  %464 = vmatprep.subr.mxu0 0.0
  %465 = vmatpush1.msra.mxu0 0.0
  %466 = vmatprep.subr.mxu0 0.0
  %467 = vmatpush1.msra.mxu0 0.0
  %468 = vmatprep.subr.mxu0 0.0
  %469 = vmatpush1.msra.mxu0 0.0
  %470 = vmatprep.subr.mxu0 0.0
  %471 = vmatpush1.msra.mxu0 0.0
  %472 = vmatprep.subr.mxu0 0.0
  %473 = vmatpush1.msra.mxu0 0.0
  %474 = vmatprep.subr.mxu0 0.0
  %475 = vmatpush1.msra.mxu0 0.0
  %476 = vmatprep.subr.mxu0 0.0
  %477 = vmatpush1.msra.mxu0 0.0
  %478 = vmatprep.subr.mxu0 0.0
  %479 = vmatpush1.msra.mxu0 0.0
  %480 = vmatprep.subr.mxu0 0.0
  %481 = vmatpush1.msra.mxu0 0.0
  %482 = vmatprep.subr.mxu0 0.0
  %483 = vmatpush1.msra.mxu0 0.0
  %484 = vmatprep.subr.mxu0 0.0
  %485 = vmatpush1.msra.mxu0 0.0
  %486 = vmatprep.subr.mxu0 0.0
  %487 = vmatpush1.msra.mxu0 0.0
  %488 = vmatprep.subr.mxu0 0.0
  %489 = vmatpush1.msra.mxu0 0.0
  %490 = vmatprep.subr.mxu0 0.0
  %491 = vmatpush1.msra.mxu0 0.0
  %492 = vmatprep.subr.mxu0 0.0
  %493 = vmatpush1.msra.mxu0 0.0
  %494 = vmatprep.subr.mxu0 0.0
  %495 = vmatpush1.msra.mxu0 0.0
  %496 = vmatprep.subr.mxu0 0.0
  %497 = vmatpush1.msra.mxu0 0.0
  %498 = vmatprep.subr.mxu0 0.0
  %499 = vmatpush1.msra.mxu0 0.0
  %500 = vmatprep.subr.mxu0 0.0
  %501 = vmatpush1.msra.mxu0 0.0
  %502 = vmatprep.subr.mxu0 0.0
  %503 = vmatpush1.msra.mxu0 0.0
  %504 = vmatprep.subr.mxu0 0.0
  %505 = vmatpush1.msra.mxu0 0.0
  %506 = vmatprep.mubr.f32.mxu0 0.0
  %507 = vmatmul.mubr.f32.gmra.mrb[0].mxu0 %v428
  %v508 = vpop.f32.mrb[0].mxu0
  %v509 = vadd.f32 %v424, %v508
  %v510 = vpop.f32.mrb[0].mxu0
  %v511 = vadd.f32 %v424, %v510
  %512 = vdwg.mxu0
  %513 = vmatprep.subr.mxu0 %v414
  %514 = vmatpush1.msra.mxu0 %v413
  %515 = vmatprep.subr.mxu0 %v440
  %516 = vmatpush1.msra.mxu0 %v437
  %517 = vmatprep.subr.mxu0 0.0
  %518 = vmatpush1.msra.mxu0 0.0
  %519 = vmatprep.subr.mxu0 0.0
  %520 = vmatpush1.msra.mxu0 0.0
  %521 = vmatprep.subr.mxu0 0.0
  %522 = vmatpush1.msra.mxu0 0.0
  %523 = vmatprep.subr.mxu0 0.0
  %524 = vmatpush1.msra.mxu0 0.0
  %525 = vmatprep.subr.mxu0 0.0
  %526 = vmatpush1.msra.mxu0 0.0
  %527 = vmatprep.subr.mxu0 0.0
  %528 = vmatpush1.msra.mxu0 0.0
  %529 = vmatprep.subr.mxu0 0.0
  %530 = vmatpush1.msra.mxu0 0.0
  %531 = vmatprep.subr.mxu0 0.0
  %532 = vmatpush1.msra.mxu0 0.0
  %533 = vmatprep.subr.mxu0 0.0
  %534 = vmatpush1.msra.mxu0 0.0
  %535 = vmatprep.subr.mxu0 0.0
  %536 = vmatpush1.msra.mxu0 0.0
  %537 = vmatprep.subr.mxu0 0.0
  %538 = vmatpush1.msra.mxu0 0.0
  %539 = vmatprep.subr.mxu0 0.0
  %540 = vmatpush1.msra.mxu0 0.0
  %541 = vmatprep.subr.mxu0 0.0
  %542 = vmatpush1.msra.mxu0 0.0
  %543 = vmatprep.subr.mxu0 0.0
  %544 = vmatpush1.msra.mxu0 0.0
  %545 = vmatprep.subr.mxu0 0.0
  %546 = vmatpush1.msra.mxu0 0.0
  %547 = vmatprep.subr.mxu0 0.0
  %548 = vmatpush1.msra.mxu0 0.0
  %549 = vmatprep.subr.mxu0 0.0
  %550 = vmatpush1.msra.mxu0 0.0
  %551 = vmatprep.subr.mxu0 0.0
  %552 = vmatpush1.msra.mxu0 0.0
  %553 = vmatprep.subr.mxu0 0.0
  %554 = vmatpush1.msra.mxu0 0.0
  %555 = vmatprep.subr.mxu0 0.0
  %556 = vmatpush1.msra.mxu0 0.0
  %557 = vmatprep.subr.mxu0 0.0
  %558 = vmatpush1.msra.mxu0 0.0
  %559 = vmatprep.subr.mxu0 0.0
  %560 = vmatpush1.msra.mxu0 0.0
  %561 = vmatprep.subr.mxu0 0.0
  %562 = vmatpush1.msra.mxu0 0.0
  %563 = vmatprep.subr.mxu0 0.0
  %564 = vmatpush1.msra.mxu0 0.0
  %565 = vmatprep.subr.mxu0 0.0
  %566 = vmatpush1.msra.mxu0 0.0
  %567 = vmatprep.subr.mxu0 0.0
  %568 = vmatpush1.msra.mxu0 0.0
  %569 = vmatprep.subr.mxu0 0.0
  %570 = vmatpush1.msra.mxu0 0.0
  %571 = vmatprep.subr.mxu0 0.0
  %572 = vmatpush1.msra.mxu0 0.0
  %573 = vmatprep.subr.mxu0 0.0
  %574 = vmatpush1.msra.mxu0 0.0
  %575 = vmatprep.subr.mxu0 0.0
  %576 = vmatpush1.msra.mxu0 0.0
  %577 = vmatprep.mubr.f32.mxu0 0.0
  %578 = vmatmul.mubr.f32.gmra.mrb[0].mxu0 %v428
  %v579 = vpop.f32.mrb[0].mxu0
  %v580 = vadd.f32 %v424, %v579
  %v581 = vpop.f32.mrb[0].mxu0
  %v582 = vadd.f32 %v424, %v581
  %583 = vdwg.mxu0
  %v584 = vsel %vm316, %v509, 0.0
  %v585 = vsel %vm316, %v511, 0.0
  %v586 = vadd.f32 %v584, %v585
  %v587 = vsel %vm316, %v580, 0.0
  %v588 = vadd.f32 %v586, %v587
  %v589 = vsel %vm316, %v582, 0.0
  %v590 = vadd.f32 %v588, %v589
  %591 = vadd.xlane.f32.xlu0 %v590
  %v592 = vpop.xlane.xlu0 %591
  %v593 = vmul.f32 %v592, %v326
  %v594 = vsub.f32 %v509, %v593
  %v595 = vsub.f32 %v511, %v593
  %v596 = vsub.f32 %v580, %v593
  %v597 = vsub.f32 %v582, %v593
  %v598 = vmul.f32 %v594, %v594
  %v599 = vmul.f32 %v595, %v595
  %v600 = vmul.f32 %v596, %v596
  %v601 = vmul.f32 %v597, %v597
  %v602 = vsel %vm316, %v598, 0.0
  %v603 = vsel %vm316, %v599, 0.0
  %v604 = vadd.f32 %v602, %v603
  %v605 = vsel %vm316, %v600, 0.0
  %v606 = vadd.f32 %v604, %v605
  %v607 = vsel %vm316, %v601, 0.0
  %v608 = vadd.f32 %v606, %v607
  %609 = vadd.xlane.f32.xlu0 %v608
  %v610 = vpop.xlane.xlu0 %609
  %v611 = vmul.f32 %v610, %v326
  %v612 = vld [vmem:[%s7] sm:$0xf]
  %v613 = vadd.f32 %v611, 1e-05
  %v614 = vrsqrt.pop %v613
  %v615 = vmul.f32 %v612, %v614
  %v616 = vld [vmem:[%s8] sm:$0xf]
  %v617 = vmul.f32 %v593, %v615
  %v618 = vsub.f32 %v616, %v617
  %620 = vset.pattern.permute.xlu0 0
  %621 = vperm.xlu0 %620, %v615
  %v622 = vpop.permute.xlu0 %621
  %v624 = vmul.f32 %v509, %v622
  %v625 = vmul.f32 %v511, %v622
  %v626 = vmul.f32 %v580, %v622
  %v627 = vmul.f32 %v582, %v622
  %629 = vset.pattern.permute.xlu0 0
  %630 = vperm.xlu0 %629, %v618
  %v631 = vpop.permute.xlu0 %630
  %v633 = vadd.f32 %v624, %v631
  %v634 = vadd.f32 %v625, %v631
  %v635 = vadd.f32 %v626, %v631
  %v636 = vadd.f32 %v627, %v631
  %v637 = vmax.f32 %v633, 0.0
  %v638 = vmax.f32 %v634, 0.0
  %v639 = vmax.f32 %v635, 0.0
  %v640 = vmax.f32 %v636, 0.0
  %v645 = vcombine.low %v637, %v638
  %v646 = vcombine.low %v639, %v640
  %649 = vst [vmem:[%s9] sm:$0xff] %v645
  %650 = vst [vmem:[%s9 + $0x8] sm:$0xff] %v646
  // Predicated region
  $region38: #{inception_forward.1} parent=0 // pred_check
    _
  $region39: #{inception_forward.1} parent=0 // pred_check_branch
    %652 = sbr.rel (0) target = $region41
  $region40: #{inception_forward.1} parent=0 // pred_region
    _
  $region41: #{inception_forward.1} parent=0 // pred_fallthru
    _
  // Predicated region
  $region42: #{inception_forward.1} parent=0 // pred_check
    _
  $region43: #{inception_forward.1} parent=0 // pred_check_branch
    %654 = sbr.rel (0) target = $region45
  $region44: #{inception_forward.1} parent=0 // pred_region
    _
  $region45: #{inception_forward.1} parent=0 // pred_fallthru
    _

</llo_original>
